<compile_context>
chip_gen: v6e
topology: v6e:2x2x1
jax: 0.10.0
libtpu: 0.0.40
codegen_flags: <defaults>
</compile_context>

<pallas_src>
import jax
import jax.numpy as jnp
from jax.experimental import pallas as pl
from jax.experimental.pallas import tpu as pltpu

K_REAL = 3    # real input features
K_PAD = 8     # sublane-aligned rows of the weight tile
M_PAD = 128   # lane-aligned output features (real: 1)


def linear_silu_kernel(x_ref, b_ref, w_ref, o_ref):
    # x_ref: (1, K_REAL)    f32 in SMEM  (the 3 input scalars)
    # b_ref: (1,)           f32 in SMEM  (bias scalar)
    # w_ref: (K_PAD, M_PAD) f32 in VMEM  (rows 0..2 hold the real weight)
    # o_ref: (1, M_PAD)     f32 in VMEM
    w = w_ref[...]
    v1 = (x_ref[0, 0] * w[0:1, :]
          + x_ref[0, 1] * w[1:2, :]
          + x_ref[0, 2] * w[2:3, :]
          + b_ref[0])                       # (1, M_PAD)
    o_ref[...] = (v1 * jax.nn.sigmoid(v1)).astype(o_ref.dtype)


def init_linear_silu_params(weight, bias):
    """Pad the static Linear(3, 1) params once, outside the per-call hot path.

    weight: (K_REAL, 1) stored as (F_in, F_out); bias: (1,).
    """
    k, m = weight.shape
    w_p = (jnp.zeros((K_PAD, M_PAD), jnp.float32)
           .at[:k, :m].set(weight.astype(jnp.float32)))
    b_p = bias.astype(jnp.float32).reshape((1,))
    return w_p, b_p


def linear_silu(params, x):
    """x: (1, K_REAL) f32 -> (1, 1) f32, SiLU(x @ W + b)."""
    w_p, b_p = params
    out_p = pl.pallas_call(
        linear_silu_kernel,
        out_shape=jax.ShapeDtypeStruct((1, M_PAD), jnp.float32),
        in_specs=[
            pl.BlockSpec(memory_space=pltpu.MemorySpace.SMEM),  # x   (1, 3)
            pl.BlockSpec(memory_space=pltpu.MemorySpace.SMEM),  # b_p (1,)
            pl.BlockSpec(memory_space=pltpu.MemorySpace.VMEM),  # w_p (8, 128)
        ],
        out_specs=pl.BlockSpec(memory_space=pltpu.MemorySpace.VMEM),
    )(x, b_p, w_p)
    return out_p[:1, :1]


if __name__ == "__main__":
    key = jax.random.PRNGKey(0)
    k_x, k_w, k_b = jax.random.split(key, 3)

    # input: torch.randn(1, 3)
    x1 = jax.random.normal(k_x, (1, 3), dtype=jnp.float32)

    # Deterministic Linear(3, 1) params, PyTorch-style uniform(-1/sqrt(3), 1/sqrt(3)),
    # stored as (F_in, F_out) = (3, 1).
    bound = 1.0 / jnp.sqrt(3.0)
    weight = jax.random.uniform(k_w, (3, 1), jnp.float32, -bound, bound)
    bias = jax.random.uniform(k_b, (1,), jnp.float32, -bound, bound)

    params = init_linear_silu_params(weight, bias)   # one-time padding (not per call)
    out = linear_silu(params, x1)
    out = jax.block_until_ready(out)

    # reference check in plain JAX
    v1 = x1 @ weight + bias
    ref = v1 * jax.nn.sigmoid(v1)
    assert out.shape == (1, 1)
    assert jnp.allclose(out, ref, atol=1e-5, rtol=1e-5)

    print("KERNEL_OK")
</pallas_src>

<mosaic_0001>
module attributes {stable_mosaic.version = 11 : i64} {
  func.func @linear_silu_kernel(%arg0: memref<1x3xf32, #tpu.memory_space<smem>>, %arg1: memref<1xf32, #tpu.memory_space<smem>>, %arg2: memref<8x128xf32, #tpu.memory_space<vmem>>, %arg3: memref<1x128xf32, #tpu.memory_space<vmem>>) attributes {dimension_semantics = [], scalar_prefetch = 0 : i64, scratch_operands = 0 : i64, tpu.core_type = #tpu.core_type<tc>} {
    %c0 = arith.constant 0 : index
    %c0_0 = arith.constant 0 : index
    %0 = vector.load %arg2[%c0, %c0_0] : memref<8x128xf32, #tpu.memory_space<vmem>>, vector<8x128xf32>
    %c0_1 = arith.constant 0 : index
    %c0_2 = arith.constant 0 : index
    %1 = memref.load %arg0[%c0_1, %c0_2] : memref<1x3xf32, #tpu.memory_space<smem>>
    %2 = vector.extract_strided_slice %0 {offsets = [0, 0], sizes = [1, 128], strides = [1, 1]} : vector<8x128xf32> to vector<1x128xf32>
    %3 = vector.broadcast %1 : f32 to vector<1x128xf32>
    %4 = arith.mulf %3, %2 : vector<1x128xf32>
    %c0_3 = arith.constant 0 : index
    %c1 = arith.constant 1 : index
    %5 = memref.load %arg0[%c0_3, %c1] : memref<1x3xf32, #tpu.memory_space<smem>>
    %6 = vector.extract_strided_slice %0 {offsets = [1, 0], sizes = [1, 128], strides = [1, 1]} : vector<8x128xf32> to vector<1x128xf32>
    %7 = vector.broadcast %5 : f32 to vector<1x128xf32>
    %8 = arith.mulf %7, %6 : vector<1x128xf32>
    %9 = arith.addf %4, %8 : vector<1x128xf32>
    %c0_4 = arith.constant 0 : index
    %c2 = arith.constant 2 : index
    %10 = memref.load %arg0[%c0_4, %c2] : memref<1x3xf32, #tpu.memory_space<smem>>
    %11 = vector.extract_strided_slice %0 {offsets = [2, 0], sizes = [1, 128], strides = [1, 1]} : vector<8x128xf32> to vector<1x128xf32>
    %12 = vector.broadcast %10 : f32 to vector<1x128xf32>
    %13 = arith.mulf %12, %11 : vector<1x128xf32>
    %14 = arith.addf %9, %13 : vector<1x128xf32>
    %c0_5 = arith.constant 0 : index
    %15 = memref.load %arg1[%c0_5] : memref<1xf32, #tpu.memory_space<smem>>
    %16 = vector.broadcast %15 : f32 to vector<1x128xf32>
    %17 = arith.addf %14, %16 : vector<1x128xf32>
    %18 = arith.negf %17 : vector<1x128xf32>
    %19 = math.exp %18 : vector<1x128xf32>
    %cst = arith.constant 1.000000e+00 : f32
    %20 = vector.broadcast %cst : f32 to vector<1x128xf32>
    %21 = arith.addf %20, %19 : vector<1x128xf32>
    %22 = arith.divf %20, %21 : vector<1x128xf32>
    %23 = arith.mulf %17, %22 : vector<1x128xf32>
    %c0_6 = arith.constant 0 : index
    %c0_7 = arith.constant 0 : index
    %24 = vector.load %arg3[%c0_6, %c0_7] : memref<1x128xf32, #tpu.memory_space<vmem>>, vector<1x128xf32>
    tpu.vector_store %arg3[%c0_6, %c0_7], %23 {strides = array<i32>} : memref<1x128xf32, #tpu.memory_space<vmem>>, vector<1x128xf32>,
    return
  }
}

</mosaic_0001>

<llo_original>
// kernel: tpu_custom_call.1
$region0: #{tpu_custom_call.1}
  #allocation0 [shape = 'u32[]', space=smem, size = 0x4, offset = 0x4, fixed_abs, tag = 'smem constant byte address 0x4 - core index']
  #allocation1 [shape = 'u32[144,128]{1,0:T(1,128)}', space=vmem, size = 0x12000, scoped, tag = 'internal scratch']
  #allocation2 [shape = 'f32[1]{0:T(128)S(6)}', space=smem, size = 0x200, scoped, tag = 'scoped memory for tpu_custom_call.1']
  %s0 = inlined_call_operand.vmem [shape: f32[1,3], index: 0, kind: input, shape index: {}]
  %s1 = inlined_call_operand.<no memory space> [shape: f32[1], index: 1, kind: input, shape index: {}]
  %s2 = inlined_call_operand.hbm [shape: f32[8,128], index: 2, kind: input, shape index: {}]
  %s3 = inlined_call_operand.hbm [shape: f32[1,128], index: 3, kind: output, shape index: {}]
  %s4 = sld [smem:[#allocation0]]
  $region30: #{tpu_custom_call.1} parent=0
    _
  %s6 = ssub.s32 1, %s4
  %s7 = scalar_select 0, %s6, %s4
  %8 = sst [smem:[#allocation2]] %s1
  $region1: #{tpu_custom_call.1} parent=0
    #allocation3 [shape = 'u8[512]{0}', space=smem, size = 0x200, scoped, tag = 'input window, operand 0, single buffered']
    #allocation4 [shape = 's32[1]{0}', space=sflag, size = 0x4, scoped, tag = 'scoped memory for tpu_custom_call.1']
    #allocation5 [shape = 's32[1]{0}', space=sflag, size = 0x4, scoped, tag = 'scoped memory for tpu_custom_call.1']
    #allocation6 [shape = 's32[1]{0}', space=sflag, size = 0x4, scoped, tag = 'scoped memory for tpu_custom_call.1']
    #allocation7 [shape = 'u8[4096]{0}', space=vmem, size = 0x1000, scoped, tag = 'input window, operand 2, single buffered']
    #allocation8 [shape = 'u8[512]{0}', space=vmem, size = 0x400, scoped, tag = 'output window, operand 0, single buffered']
    %9 = vsyncpa [#allocation6], 0
    %10 = vsyncpa [#allocation4], 0
    %11 = vsyncpa [#allocation5], 0
    // Predicated region
    $region2: #{tpu_custom_call.1} parent=1 // pred_check
      _
    $region3: #{tpu_custom_call.1} parent=1 // pred_check_branch
      %13 = sbr.rel (0) target = $region5
    $region4: #{tpu_custom_call.1} parent=1 // pred_region
      %s15 = ssub.s32 16, 16
      %16 = vsyncadd [#allocation6], %s15
      %s18 = sshll.u32 %s0, 4
      %s19 = int_to_ptr.vmem [resolvable:$true] %s18
      %21 = dma.vmem_to_smem %s19, 16, [#allocation3], [#allocation6]
    $region5: #{tpu_custom_call.1} parent=1 // pred_fallthru
      _
    // Predicated region
    $region6: #{tpu_custom_call.1} parent=1 // pred_check
      _
    $region7: #{tpu_custom_call.1} parent=1 // pred_check_branch
      %23 = sbr.rel (0) target = $region9
    $region8: #{tpu_custom_call.1} parent=1 // pred_region
      _
    $region9: #{tpu_custom_call.1} parent=1 // pred_fallthru
      _
    // Predicated region
    $region10: #{tpu_custom_call.1} parent=1 // pred_check
      _
    $region11: #{tpu_custom_call.1} parent=1 // pred_check_branch
      %25 = sbr.rel (0) target = $region13
    $region12: #{tpu_custom_call.1} parent=1 // pred_region
      %s27 = ssub.s32 128, 128
      %28 = vsyncadd [#allocation4], %s27
      %s30 = sshll.u32 [#allocation7], 4
      %s31 = int_to_ptr.vmem [resolvable:$true] %s30
      %33 = dma.hbm_to_vmem [thread:$0]  %s2, 128, %s31, [#allocation4]
    $region13: #{tpu_custom_call.1} parent=1 // pred_fallthru
      _
    // Predicated region
    $region14: #{tpu_custom_call.1} parent=1 // pred_check
      _
    $region15: #{tpu_custom_call.1} parent=1 // pred_check_branch
      %35 = sbr.rel (0) target = $region17
    $region16: #{tpu_custom_call.1} parent=1 // pred_region
      %36 = dma.done [#allocation6], 16
    $region17: #{tpu_custom_call.1} parent=1 // pred_fallthru
      _
    // Predicated region
    $region18: #{tpu_custom_call.1} parent=1 // pred_check
      _
    $region19: #{tpu_custom_call.1} parent=1 // pred_check_branch
      %38 = sbr.rel (0) target = $region21
    $region20: #{tpu_custom_call.1} parent=1 // pred_region
      %39 = dma.done [#allocation4], 128
    $region21: #{tpu_custom_call.1} parent=1 // pred_fallthru
      _
    %40 = sfence
    %v41 = vld [vmem:[#allocation7] sm:$0xff]
    %s42 = sld [smem:[#allocation3]]
    %v43 = vstv %s42
    %v44 = vmul.f32 %v43, %v41
    %s45 = sld [smem:[#allocation3 + $0x1]]
    %v46 = vstv %s45
    %v47 = vmul.f32 %v46, %v41
    %v49 = vrot.slane %v47, 1
    %v51 = vadd.f32 %v44, %v49
    %s52 = sld [smem:[#allocation3 + $0x2]]
    %v53 = vstv %s52
    %v54 = vmul.f32 %v53, %v41
    %v56 = vrot.slane %v54, 2
    %v58 = vadd.f32 %v51, %v56
    %s59 = sld [smem:[#allocation2]]
    %v60 = vstv %s59
    %v61 = vadd.f32 %v58, %v60
    %v62 = vxor.u32 %v61, 2147483648
    %v63 = vmul.f32 %v62, 1.442695
    %v64 = vpow.pop %v63
    %v65 = vadd.f32 %v64, 1.0
    %v66 = vrcp.pop %v65
    %v67 = vmul.f32 1.0, %v66
    %v68 = vmul.f32 %v61, %v67
    %69 = vst [vmem:[#allocation8] sm:$0x1] %v68
    // Predicated region
    $region22: #{tpu_custom_call.1} parent=1 // pred_check
      _
    $region23: #{tpu_custom_call.1} parent=1 // pred_check_branch
      %71 = sbr.rel (0) target = $region25
    $region24: #{tpu_custom_call.1} parent=1 // pred_region
      %s73 = ssub.s32 16, 16
      %74 = vsyncadd [#allocation5], %s73
      %s76 = sshll.u32 [#allocation8], 4
      %s77 = int_to_ptr.vmem [resolvable:$true] %s76
      %79 = dma.vmem_to_hbm [thread:$0]  %s77, 16, %s3, [#allocation5]
    $region25: #{tpu_custom_call.1} parent=1 // pred_fallthru
      _
    // Predicated region
    $region26: #{tpu_custom_call.1} parent=1 // pred_check
      _
    $region27: #{tpu_custom_call.1} parent=1 // pred_check_branch
      %81 = sbr.rel (0) target = $region29
    $region28: #{tpu_custom_call.1} parent=1 // pred_region
      %82 = dma.done [#allocation5], 16
    $region29: #{tpu_custom_call.1} parent=1 // pred_fallthru
      _
    %83 = vsyncpa [#allocation4], 1
    %84 = vsyncpa [#allocation5], 1
    %85 = vsyncpa [#allocation6], 1

</llo_original>
